<compile_context>
chip_gen: v7x
topology: tpu7x:2x2x1
jax: 0.10.0
libtpu: 0.0.40
codegen_flags: <defaults>
</compile_context>

<pallas_src>
import math

import jax
import jax.numpy as jnp
from jax.experimental import pallas as pl
from jax.experimental.pallas import tpu as pltpu


LANE = 128        # vreg lane width
SUBLANE = 8       # vreg sublane height
VMEM_LIMIT = 60 * 1024 * 1024   # explicit scoped-VMEM cap (< v7x 64 MiB)


def _round_up(x, m):
    return ((x + m - 1) // m) * m


def _pick_tile(dim, pref, align):
    """Largest multiple of `align` that divides `dim`, capped at `pref`."""
    if dim % align != 0:
        return dim
    t = min(pref, dim)
    t -= t % align
    if t <= 0:
        return dim
    while dim % t != 0:
        t -= align
    return t


# --------------------------------------------------------------------------
# Tiled matmul + bias kernel (used for the hoisted input projection and FC).
# --------------------------------------------------------------------------
def _matmul_bias_kernel(x_ref, w_ref, b_ref, o_ref, acc_ref):
    k = pl.program_id(2)

    @pl.when(k == 0)
    def _():
        acc_ref[...] = jnp.zeros_like(acc_ref)

    acc_ref[...] += jnp.dot(x_ref[...], w_ref[...],
                            preferred_element_type=jnp.float32)

    @pl.when(k == pl.num_programs(2) - 1)
    def _():
        o_ref[...] = (acc_ref[...] + b_ref[...]).astype(o_ref.dtype)


def matmul_bias(x, w_t, b_row, *, tm_pref=256, tn_pref=512, tk_pref=512):
    """x: (N, K), w_t: (K, V), b_row: (1, V).  Dims pre-padded:
    N % 8 == 0, K % 128 == 0, V % 128 == 0.  Returns (N, V) float32."""
    N, K = x.shape
    V = w_t.shape[1]
    tm = _pick_tile(N, tm_pref, SUBLANE)
    tn = _pick_tile(V, tn_pref, LANE)
    tk = _pick_tile(K, tk_pref, LANE)
    grid = (N // tm, V // tn, K // tk)
    return pl.pallas_call(
        _matmul_bias_kernel,
        out_shape=jax.ShapeDtypeStruct((N, V), jnp.float32),
        grid_spec=pltpu.PrefetchScalarGridSpec(
            num_scalar_prefetch=0,
            grid=grid,
            in_specs=[
                pl.BlockSpec((tm, tk), lambda i, j, k: (i, k)),
                pl.BlockSpec((tk, tn), lambda i, j, k: (k, j)),
                pl.BlockSpec((1, tn), lambda i, j, k: (0, j)),
            ],
            out_specs=pl.BlockSpec((tm, tn), lambda i, j, k: (i, j)),
            scratch_shapes=[pltpu.VMEM((tm, tn), jnp.float32)],
        ),
        compiler_params=pltpu.CompilerParams(
            dimension_semantics=("parallel", "parallel", "arbitrary"),
            vmem_limit_bytes=VMEM_LIMIT),
    )(x, w_t, b_row)


# --------------------------------------------------------------------------
# LSTM recurrence kernel: per-step work is a single h @ W_hh^T matmul plus
# elementwise gate math; input projection (incl. bias) is precomputed in gx.
# --------------------------------------------------------------------------
def _lstm_recurrence_kernel(gx_ref, whh_ref, h0_ref, c0_ref,
                            y_ref, hn_ref, cn_ref, h_sc, c_sc):
    t = pl.program_id(1)
    Hp = h0_ref.shape[-1]

    @pl.when(t == 0)
    def _():
        h_sc[...] = h0_ref[...]
        c_sc[...] = c0_ref[...]

    gates = gx_ref[0] + jnp.dot(h_sc[...], whh_ref[...],
                                preferred_element_type=jnp.float32)
    # Gate slices are lane-aligned (Hp is a multiple of 128).
    i_g = jax.nn.sigmoid(gates[:, 0 * Hp:1 * Hp])
    f_g = jax.nn.sigmoid(gates[:, 1 * Hp:2 * Hp])
    g_g = jnp.tanh(gates[:, 2 * Hp:3 * Hp])
    o_g = jax.nn.sigmoid(gates[:, 3 * Hp:4 * Hp])
    c_new = f_g * c_sc[...] + i_g * g_g
    h_new = o_g * jnp.tanh(c_new)
    c_sc[...] = c_new
    h_sc[...] = h_new
    y_ref[0] = h_new

    @pl.when(t == pl.num_programs(1) - 1)
    def _():
        hn_ref[...] = h_sc[...]
        cn_ref[...] = c_sc[...]


def lstm_layer(gx, whh_t, h0, c0):
    """gx: (T, Bp, 4*Hp) precomputed x@W_ih^T + b;  whh_t: (Hp, 4*Hp);
    h0, c0: (Bp, Hp).  Returns (y (T, Bp, Hp), hn, cn)."""
    T, Bp, G = gx.shape
    Hp = whh_t.shape[0]
    # Split the padded batch into chunks so the "parallel" axis can be sharded
    # across v7x's two TensorCores; each chunk keeps >= 8 sublanes.
    nb = 2 if (Bp % 16 == 0 and Bp >= 16) else 1
    Bt = Bp // nb

    y, hn, cn = pl.pallas_call(
        _lstm_recurrence_kernel,
        out_shape=(
            jax.ShapeDtypeStruct((T, Bp, Hp), jnp.float32),
            jax.ShapeDtypeStruct((Bp, Hp), jnp.float32),
            jax.ShapeDtypeStruct((Bp, Hp), jnp.float32),
        ),
        grid_spec=pltpu.PrefetchScalarGridSpec(
            num_scalar_prefetch=0,
            grid=(nb, T),
            in_specs=[
                pl.BlockSpec((1, Bt, G), lambda b, t: (t, b, 0)),   # gx slice
                pl.BlockSpec((Hp, G), lambda b, t: (0, 0)),         # W_hh^T
                pl.BlockSpec((Bt, Hp), lambda b, t: (b, 0)),        # h0
                pl.BlockSpec((Bt, Hp), lambda b, t: (b, 0)),        # c0
            ],
            out_specs=(
                pl.BlockSpec((1, Bt, Hp), lambda b, t: (t, b, 0)),  # y slice
                pl.BlockSpec((Bt, Hp), lambda b, t: (b, 0)),        # h_n
                pl.BlockSpec((Bt, Hp), lambda b, t: (b, 0)),        # c_n
            ),
            scratch_shapes=[
                pltpu.VMEM((Bt, Hp), jnp.float32),
                pltpu.VMEM((Bt, Hp), jnp.float32),
            ],
        ),
        compiler_params=pltpu.CompilerParams(
            dimension_semantics=("parallel", "arbitrary"),
            vmem_limit_bytes=VMEM_LIMIT),
    )(gx, whh_t, h0, c0)
    return y, hn, cn


# --------------------------------------------------------------------------
# Parameters (PyTorch layout) + one-time kernel-friendly preparation.
# --------------------------------------------------------------------------
def init_params(key, vocab_size, embedding_dim, hidden_dim):
    ks = jax.random.split(key, 16)
    it = iter(ks)

    def unif(k, shape, a):
        return jax.random.uniform(k, shape, jnp.float32, -a, a)

    params = {
        "embedding": unif(next(it), (vocab_size, embedding_dim), 0.1),
        "fc_w": unif(next(it), (vocab_size, embedding_dim), 0.1),
        "fc_b": jnp.zeros((vocab_size,), jnp.float32),
        "lstms": [],
    }
    # LSTM stack: E->H, H->H, H->E (matching the PyTorch module).
    layer_dims = [(embedding_dim, hidden_dim),
                  (hidden_dim, hidden_dim),
                  (hidden_dim, embedding_dim)]
    for in_dim, out_dim in layer_dims:
        stdv = 1.0 / math.sqrt(out_dim)          # nn.LSTM default init
        params["lstms"].append({
            "w_ih": unif(next(it), (4 * out_dim, in_dim), stdv),
            "w_hh": unif(next(it), (4 * out_dim, out_dim), stdv),
            "b_ih": unif(next(it), (4 * out_dim,), stdv),
            "b_hh": unif(next(it), (4 * out_dim,), stdv),
        })
    return params


def _pad_gate_weight_t(w, out_dim, out_pad, in_dim, in_pad):
    """(4*out_dim, in_dim) PyTorch gate weight -> transposed, per-gate lane
    padded (in_pad, 4*out_pad), gate order i,f,g,o preserved."""
    w4 = w.reshape(4, out_dim, in_dim)
    w4 = jnp.pad(w4, ((0, 0), (0, out_pad - out_dim), (0, in_pad - in_dim)))
    return jnp.transpose(w4, (2, 0, 1)).reshape(in_pad, 4 * out_pad)


def prepare_params(params, batch_size):
    """Pre-transpose / pad all weights ONCE so the forward pays no layout work."""
    E = params["embedding"].shape[1]
    V = params["fc_w"].shape[0]
    Bp = _round_up(max(batch_size, SUBLANE), SUBLANE)
    Ep = _round_up(E, LANE)
    Vp = _round_up(V, LANE)
    prep = {
        "embedding": params["embedding"],
        "fc_w_t": jnp.pad(params["fc_w"].T, ((0, Ep - E), (0, Vp - V))),
        "fc_b": jnp.pad(params["fc_b"], (0, Vp - V)).reshape(1, Vp),
        "B": batch_size, "Bp": Bp, "E": E, "Ep": Ep, "V": V, "Vp": Vp,
        "lstms": [],
    }
    for lp in params["lstms"]:
        out_dim = lp["w_hh"].shape[1]
        in_dim = lp["w_ih"].shape[1]
        Hp = _round_up(out_dim, LANE)
        Ip = _round_up(in_dim, LANE)
        b = (lp["b_ih"] + lp["b_hh"]).reshape(4, out_dim)
        b = jnp.pad(b, ((0, 0), (0, Hp - out_dim))).reshape(1, 4 * Hp)
        prep["lstms"].append({
            "wih_t": _pad_gate_weight_t(lp["w_ih"], out_dim, Hp, in_dim, Ip),
            "whh_t": _pad_gate_weight_t(lp["w_hh"], out_dim, Hp, out_dim, Hp),
            "b": b, "H": out_dim, "Hp": Hp, "In": in_dim, "Ip": Ip,
        })
    return prep


def init_hidden_states(prep):
    return [(jnp.zeros((prep["B"], lp["H"]), jnp.float32),
             jnp.zeros((prep["B"], lp["H"]), jnp.float32))
            for lp in prep["lstms"]]


# --------------------------------------------------------------------------
# Forward pass (eval-mode semantics).
# --------------------------------------------------------------------------
def language_model_forward(prep, src, hidden):
    """src: (B, T) int32 token ids; hidden: list of (h0, c0) each (B, H_layer).
    Returns (prediction (B, T, V), new_hidden)."""
    # TODO(synk): training-mode embedded_dropout / LockedDropout / WeightDrop
    # (random masks) are identity in eval mode and are not reproduced here.
    B, T = src.shape
    Bp, Ep, Vp = prep["Bp"], prep["Ep"], prep["Vp"]

    # Embedding gather (tiny gather: left to XLA, no efficient Pallas win).
    emb = jnp.take(prep["embedding"], src, axis=0)             # (B, T, E)
    x = jnp.transpose(emb, (1, 0, 2)).astype(jnp.float32)      # (T, B, E)
    x = jnp.pad(x, ((0, 0), (0, Bp - B), (0, Ep - prep["E"]))) # (T, Bp, Ep)

    new_hidden = []
    for lp, (h0, c0) in zip(prep["lstms"], hidden):
        H, Hp, Ip = lp["H"], lp["Hp"], lp["Ip"]
        Tt, _, in_cur = x.shape
        assert in_cur == Ip, (in_cur, Ip)
        # Hoisted input projection: one large MXU-friendly matmul (+ bias).
        gx = matmul_bias(x.reshape(Tt * Bp, Ip), lp["wih_t"], lp["b"])
        gx = gx.reshape(Tt, Bp, 4 * Hp)
        h0p = jnp.pad(h0.astype(jnp.float32), ((0, Bp - B), (0, Hp - H)))
        c0p = jnp.pad(c0.astype(jnp.float32), ((0, Bp - B), (0, Hp - H)))
        y, hn, cn = lstm_layer(gx, lp["whh_t"], h0p, c0p)
        new_hidden.append((hn[:B, :H], cn[:B, :H]))
        x = y            # padded hidden columns are exactly 0 -> safe to chain

    # TODO(synk): optionally store inter-layer activations in bf16 on v6e/v7x.
    # Final projection, tiled over (rows, vocab).
    logits = matmul_bias(x.reshape(T * Bp, x.shape[-1]),
                         prep["fc_w_t"], prep["fc_b"])          # (T*Bp, Vp)
    logits = logits.reshape(T, Bp, Vp)[:, :B, :prep["V"]]
    prediction = jnp.transpose(logits, (1, 0, 2))               # (B, T, V)
    return prediction, new_hidden


# --------------------------------------------------------------------------
# Pure-JAX reference (eval-mode PyTorch semantics) for correctness check.
# --------------------------------------------------------------------------
def _reference_forward(params, src, hidden):
    x = jnp.take(params["embedding"], src, axis=0).astype(jnp.float32)
    for lp, (h0, c0) in zip(params["lstms"], hidden):
        H = lp["w_hh"].shape[1]

        def step(carry, x_t, lp=lp, H=H):
            h, c = carry
            g = (x_t @ lp["w_ih"].T + h @ lp["w_hh"].T
                 + lp["b_ih"] + lp["b_hh"])
            i = jax.nn.sigmoid(g[:, 0 * H:1 * H])
            f = jax.nn.sigmoid(g[:, 1 * H:2 * H])
            gg = jnp.tanh(g[:, 2 * H:3 * H])
            o = jax.nn.sigmoid(g[:, 3 * H:4 * H])
            c = f * c + i * gg
            h = o * jnp.tanh(c)
            return (h, c), h

        xs = jnp.transpose(x, (1, 0, 2))
        _, ys = jax.lax.scan(step, (h0, c0), xs)
        x = jnp.transpose(ys, (1, 0, 2))
    return x @ params["fc_w"].T + params["fc_b"]


# --------------------------------------------------------------------------
if __name__ == "__main__":
    vocab_size = 64
    embedding_dim = 32
    hidden_dim = 32
    batch = 2
    seq = 8

    key = jax.random.PRNGKey(0)
    k_param, k_src = jax.random.split(key)
    params = init_params(k_param, vocab_size, embedding_dim, hidden_dim)
    src = jax.random.randint(k_src, (batch, seq), 0, vocab_size,
                             dtype=jnp.int32)

    prep = prepare_params(params, batch)
    hidden = init_hidden_states(prep)

    prediction, new_hidden = language_model_forward(prep, src, hidden)
    prediction = jax.block_until_ready(prediction)

    assert prediction.shape == (batch, seq, vocab_size), prediction.shape
    assert bool(jnp.all(jnp.isfinite(prediction)))

    ref = _reference_forward(params, src, hidden)
    max_err = float(jnp.max(jnp.abs(prediction - ref)))
    assert max_err < 1e-3, max_err

    print("KERNEL_OK")
</pallas_src>

<mosaic_0001>
module attributes {stable_mosaic.version = 11 : i64} {
  func.func @_matmul_bias_kernel(%arg0: i32, %arg1: i32, %arg2: i32, %arg3: memref<64x128xf32, #tpu.memory_space<vmem>>, %arg4: memref<128x512xf32, #tpu.memory_space<vmem>>, %arg5: memref<1x512xf32, #tpu.memory_space<vmem>>, %arg6: memref<64x512xf32, #tpu.memory_space<vmem>>, %arg7: memref<64x512xf32, #tpu.memory_space<vmem>>) attributes {dimension_semantics = [#tpu.dimension_semantics<parallel>, #tpu.dimension_semantics<parallel>, #tpu.dimension_semantics<arbitrary>], iteration_bounds = array<i64: 1, 1, 1>, scalar_prefetch = 0 : i64, scratch_operands = 1 : i64, tpu.core_type = #tpu.core_type<tc>, window_params = [{transform_indices = @transform_0, window_bounds = array<i64: 64, 128>}, {transform_indices = @transform_1, window_bounds = array<i64: 128, 512>}, {transform_indices = @transform_2, window_bounds = array<i64: 1, 512>}, {transform_indices = @transform_3, window_bounds = array<i64: 64, 512>}]} {
    %c0_i32 = arith.constant 0 : i32
    %0 = arith.cmpi eq, %arg2, %c0_i32 : i32
    %1 = arith.extui %0 : i1 to i32
    %c0_i32_0 = arith.constant 0 : i32
    %2 = arith.cmpi ne, %1, %c0_i32_0 : i32
    scf.if %2 {
      %cst_10 = arith.constant 0.000000e+00 : f32
      %12 = vector.broadcast %cst_10 : f32 to vector<64x512xf32>
      %c0_11 = arith.constant 0 : index
      %c0_12 = arith.constant 0 : index
      %13 = vector.load %arg7[%c0_11, %c0_12] : memref<64x512xf32, #tpu.memory_space<vmem>>, vector<64x512xf32>
      tpu.vector_store %arg7[%c0_11, %c0_12], %12 {strides = array<i32>} : memref<64x512xf32, #tpu.memory_space<vmem>>, vector<64x512xf32>,
    } else {
    }
    %c0 = arith.constant 0 : index
    %c0_1 = arith.constant 0 : index
    %3 = vector.load %arg7[%c0, %c0_1] : memref<64x512xf32, #tpu.memory_space<vmem>>, vector<64x512xf32>
    %c0_2 = arith.constant 0 : index
    %c0_3 = arith.constant 0 : index
    %4 = vector.load %arg3[%c0_2, %c0_3] : memref<64x128xf32, #tpu.memory_space<vmem>>, vector<64x128xf32>
    %c0_4 = arith.constant 0 : index
    %c0_5 = arith.constant 0 : index
    %5 = vector.load %arg4[%c0_4, %c0_5] : memref<128x512xf32, #tpu.memory_space<vmem>>, vector<128x512xf32>
    %cst = arith.constant dense<0.000000e+00> : vector<64x512xf32>
    %6 = tpu.matmul %4, %5, %cst {dimension_numbers = #tpu.dot_dimension_numbers<[1], [0], [0], [1], [0, 0, 1, 1], [], []>} : vector<64x128xf32>, vector<128x512xf32>, vector<64x512xf32> -> vector<64x512xf32>
    %7 = arith.addf %3, %6 : vector<64x512xf32>
    %c0_6 = arith.constant 0 : index
    %c0_7 = arith.constant 0 : index
    %8 = vector.load %arg7[%c0_6, %c0_7] : memref<64x512xf32, #tpu.memory_space<vmem>>, vector<64x512xf32>
    tpu.vector_store %arg7[%c0_6, %c0_7], %7 {strides = array<i32>} : memref<64x512xf32, #tpu.memory_space<vmem>>, vector<64x512xf32>,
    %c0_i32_8 = arith.constant 0 : i32
    %9 = arith.cmpi eq, %arg2, %c0_i32_8 : i32
    %10 = arith.extui %9 : i1 to i32
    %c0_i32_9 = arith.constant 0 : i32
    %11 = arith.cmpi ne, %10, %c0_i32_9 : i32
    scf.if %11 {
      %c0_10 = arith.constant 0 : index
      %c0_11 = arith.constant 0 : index
      %12 = vector.load %arg7[%c0_10, %c0_11] : memref<64x512xf32, #tpu.memory_space<vmem>>, vector<64x512xf32>
      %c0_12 = arith.constant 0 : index
      %c0_13 = arith.constant 0 : index
      %13 = vector.load %arg5[%c0_12, %c0_13] : memref<1x512xf32, #tpu.memory_space<vmem>>, vector<1x512xf32>
      %14 = vector.broadcast %13 : vector<1x512xf32> to vector<64x512xf32>
      %15 = arith.addf %12, %14 : vector<64x512xf32>
      %c0_14 = arith.constant 0 : index
      %c0_15 = arith.constant 0 : index
      %16 = vector.load %arg6[%c0_14, %c0_15] : memref<64x512xf32, #tpu.memory_space<vmem>>, vector<64x512xf32>
      tpu.vector_store %arg6[%c0_14, %c0_15], %15 {strides = array<i32>} : memref<64x512xf32, #tpu.memory_space<vmem>>, vector<64x512xf32>,
    } else {
    }
    return
  }
  func.func @transform_0(%arg0: i32, %arg1: i32, %arg2: i32) -> (i32, i32) {
    %c0_i32 = arith.constant 0 : i32
    return %arg0, %arg2 : i32, i32
  }
  func.func @transform_1(%arg0: i32, %arg1: i32, %arg2: i32) -> (i32, i32) {
    %c0_i32 = arith.constant 0 : i32
    return %arg2, %arg1 : i32, i32
  }
  func.func @transform_2(%arg0: i32, %arg1: i32, %arg2: i32) -> (i32, i32) {
    %c0_i32 = arith.constant 0 : i32
    %c0_i32_0 = arith.constant 0 : i32
    return %c0_i32, %arg1 : i32, i32
  }
  func.func @transform_3(%arg0: i32, %arg1: i32, %arg2: i32) -> (i32, i32) {
    %c0_i32 = arith.constant 0 : i32
    return %arg0, %arg1 : i32, i32
  }
}

</mosaic_0001>

<llo_original>
// kernel: tpu_custom_call.1
$region0: #{tpu_custom_call.1}
  #allocation0 [shape = 'u32[]', space=smem, size = 0x4, offset = 0x4, fixed_abs, tag = 'smem constant byte address 0x4 - core index']
  #allocation1 [shape = 'u32[144,128]{1,0:T(1,128)}', space=vmem, size = 0x12000, scoped, tag = 'internal scratch']
  #allocation2 [shape = 'f32[64,512]{1,0:T(8,128)}', space=vmem, size = 0x20000, scoped, tag = 'scratch operand']
  %s0 = inlined_call_operand.hbm [shape: f32[64,128], index: 0, kind: input, shape index: {}]
  %s1 = inlined_call_operand.hbm [shape: f32[128,512], index: 1, kind: input, shape index: {}]
  %s2 = inlined_call_operand.vmem [shape: f32[1,512], index: 2, kind: input, shape index: {}]
  %s3 = inlined_call_operand.hbm [shape: f32[64,512], index: 3, kind: output, shape index: {}]
  %s4 = sld [smem:[#allocation0]]
  $region38: #{tpu_custom_call.1} parent=0
    _
  %s6 = ssub.s32 1, %s4
  %s7 = scalar_select 0, %s6, %s4
  $region1: #{tpu_custom_call.1} parent=0
    #allocation3 [shape = 'u8[32768]{0}', space=vmem, size = 0x8000, scoped, tag = 'input window, operand 0, single buffered']
    #allocation4 [shape = 's32[1]{0}', space=sflag, size = 0x4, scoped, tag = 'scoped memory for tpu_custom_call.1']
    #allocation5 [shape = 's32[1]{0}', space=sflag, size = 0x4, scoped, tag = 'scoped memory for tpu_custom_call.1']
    #allocation6 [shape = 'u8[262144]{0}', space=vmem, size = 0x40000, scoped, tag = 'input window, operand 1, single buffered']
    #allocation7 [shape = 's32[1]{0}', space=sflag, size = 0x4, scoped, tag = 'scoped memory for tpu_custom_call.1']
    #allocation8 [shape = 'u8[131072]{0}', space=vmem, size = 0x20000, scoped, tag = 'output window, operand 0, single buffered']
    %8 = vsyncpa [#allocation4], 0
    %9 = vsyncpa [#allocation7], 0
    %10 = vsyncpa [#allocation5], 0
    // Predicated region
    $region2: #{tpu_custom_call.1} parent=1 // pred_check
      _
    $region3: #{tpu_custom_call.1} parent=1 // pred_check_branch
      %12 = sbr.rel (0) target = $region5
    $region4: #{tpu_custom_call.1} parent=1 // pred_region
      %s14 = ssub.s32 1024, 1024
      %15 = vsyncadd [#allocation4], %s14
      %s16 = sshll.u32 [#allocation3], 4
      %s17 = int_to_ptr.vmem [resolvable:$true] %s16
      %22 = dma.hbm_to_vmem [thread:$0]  %s0, 1024, %s17, [#allocation4], 128, 128, 8
    $region5: #{tpu_custom_call.1} parent=1 // pred_fallthru
      _
    // Predicated region
    $region6: #{tpu_custom_call.1} parent=1 // pred_check
      _
    $region7: #{tpu_custom_call.1} parent=1 // pred_check_branch
      %24 = sbr.rel (0) target = $region9
    $region8: #{tpu_custom_call.1} parent=1 // pred_region
      %s26 = ssub.s32 8192, 8192
      %27 = vsyncadd [#allocation7], %s26
      %s28 = sshll.u32 [#allocation6], 4
      %s29 = int_to_ptr.vmem [resolvable:$true] %s28
      %34 = dma.hbm_to_vmem [thread:$0]  %s1, 8192, %s29, [#allocation7], 512, 512, 32
    $region9: #{tpu_custom_call.1} parent=1 // pred_fallthru
      _
    // Predicated region
    $region10: #{tpu_custom_call.1} parent=1 // pred_check
      _
    $region11: #{tpu_custom_call.1} parent=1 // pred_check_branch
      %36 = sbr.rel (0) target = $region13
    $region12: #{tpu_custom_call.1} parent=1 // pred_region
      _
    $region13: #{tpu_custom_call.1} parent=1 // pred_fallthru
      _
    // Predicated region
    $region14: #{tpu_custom_call.1} parent=1 // pred_check
      _
    $region15: #{tpu_custom_call.1} parent=1 // pred_check_branch
      %38 = sbr.rel (0) target = $region17
    $region16: #{tpu_custom_call.1} parent=1 // pred_region
      %39 = dma.done [#allocation4], 1024
    $region17: #{tpu_custom_call.1} parent=1 // pred_fallthru
      _
    // Predicated region
    $region18: #{tpu_custom_call.1} parent=1 // pred_check
      _
    $region19: #{tpu_custom_call.1} parent=1 // pred_check_branch
      %41 = sbr.rel (0) target = $region21
    $region20: #{tpu_custom_call.1} parent=1 // pred_region
      %42 = dma.done [#allocation7], 8192
    $region21: #{tpu_custom_call.1} parent=1 // pred_fallthru
      _
    %p43 = scmp.eq.s32.totalorder 0, 0
    // Predicated region
    $region22: #{tpu_custom_call.1} parent=1 // pred_check
      %p44 = pneg %p43
    $region23: #{tpu_custom_call.1} parent=1 // pred_check_branch
      %46 = sbr.rel (%p44) target = $region25
    $region24: #{tpu_custom_call.1} parent=1 // pred_region
      %47 = vst [vmem:[#allocation2] sm:$0xff] 0.0
      %48 = vst [vmem:[#allocation2 + $0x8] sm:$0xff] 0.0
      %49 = vst [vmem:[#allocation2 + $0x10] sm:$0xff] 0.0
      %50 = vst [vmem:[#allocation2 + $0x18] sm:$0xff] 0.0
      %51 = vst [vmem:[#allocation2 + $0x20] sm:$0xff] 0.0
      %52 = vst [vmem:[#allocation2 + $0x28] sm:$0xff] 0.0
      %53 = vst [vmem:[#allocation2 + $0x30] sm:$0xff] 0.0
      %54 = vst [vmem:[#allocation2 + $0x38] sm:$0xff] 0.0
      %55 = vst [vmem:[#allocation2 + $0x40] sm:$0xff] 0.0
      %56 = vst [vmem:[#allocation2 + $0x48] sm:$0xff] 0.0
      %57 = vst [vmem:[#allocation2 + $0x50] sm:$0xff] 0.0
      %58 = vst [vmem:[#allocation2 + $0x58] sm:$0xff] 0.0
      %59 = vst [vmem:[#allocation2 + $0x60] sm:$0xff] 0.0
      %60 = vst [vmem:[#allocation2 + $0x68] sm:$0xff] 0.0
      %61 = vst [vmem:[#allocation2 + $0x70] sm:$0xff] 0.0
      %62 = vst [vmem:[#allocation2 + $0x78] sm:$0xff] 0.0
      %63 = vst [vmem:[#allocation2 + $0x80] sm:$0xff] 0.0
      %64 = vst [vmem:[#allocation2 + $0x88] sm:$0xff] 0.0
      %65 = vst [vmem:[#allocation2 + $0x90] sm:$0xff] 0.0
      %66 = vst [vmem:[#allocation2 + $0x98] sm:$0xff] 0.0
      %67 = vst [vmem:[#allocation2 + $0xa0] sm:$0xff] 0.0
      %68 = vst [vmem:[#allocation2 + $0xa8] sm:$0xff] 0.0
      %69 = vst [vmem:[#allocation2 + $0xb0] sm:$0xff] 0.0
      %70 = vst [vmem:[#allocation2 + $0xb8] sm:$0xff] 0.0
      %71 = vst [vmem:[#allocation2 + $0xc0] sm:$0xff] 0.0
      %72 = vst [vmem:[#allocation2 + $0xc8] sm:$0xff] 0.0
      %73 = vst [vmem:[#allocation2 + $0xd0] sm:$0xff] 0.0
      %74 = vst [vmem:[#allocation2 + $0xd8] sm:$0xff] 0.0
      %75 = vst [vmem:[#allocation2 + $0xe0] sm:$0xff] 0.0
      %76 = vst [vmem:[#allocation2 + $0xe8] sm:$0xff] 0.0
      %77 = vst [vmem:[#allocation2 + $0xf0] sm:$0xff] 0.0
      %78 = vst [vmem:[#allocation2 + $0xf8] sm:$0xff] 0.0
    $region25: #{tpu_custom_call.1} parent=1 // pred_fallthru
      _
    %v79 = vld [vmem:[#allocation2] sm:$0xff]
    %v80 = vld [vmem:[#allocation2 + $0x8] sm:$0xff]
    %v81 = vld [vmem:[#allocation2 + $0x10] sm:$0xff]
    %v82 = vld [vmem:[#allocation2 + $0x18] sm:$0xff]
    %v83 = vld [vmem:[#allocation2 + $0x20] sm:$0xff]
    %v84 = vld [vmem:[#allocation2 + $0x28] sm:$0xff]
    %v85 = vld [vmem:[#allocation2 + $0x30] sm:$0xff]
    %v86 = vld [vmem:[#allocation2 + $0x38] sm:$0xff]
    %v87 = vld [vmem:[#allocation2 + $0x40] sm:$0xff]
    %v88 = vld [vmem:[#allocation2 + $0x48] sm:$0xff]
    %v89 = vld [vmem:[#allocation2 + $0x50] sm:$0xff]
    %v90 = vld [vmem:[#allocation2 + $0x58] sm:$0xff]
    %v91 = vld [vmem:[#allocation2 + $0x60] sm:$0xff]
    %v92 = vld [vmem:[#allocation2 + $0x68] sm:$0xff]
    %v93 = vld [vmem:[#allocation2 + $0x70] sm:$0xff]
    %v94 = vld [vmem:[#allocation2 + $0x78] sm:$0xff]
    %v95 = vld [vmem:[#allocation2 + $0x80] sm:$0xff]
    %v96 = vld [vmem:[#allocation2 + $0x88] sm:$0xff]
    %v97 = vld [vmem:[#allocation2 + $0x90] sm:$0xff]
    %v98 = vld [vmem:[#allocation2 + $0x98] sm:$0xff]
    %v99 = vld [vmem:[#allocation2 + $0xa0] sm:$0xff]
    %v100 = vld [vmem:[#allocation2 + $0xa8] sm:$0xff]
    %v101 = vld [vmem:[#allocation2 + $0xb0] sm:$0xff]
    %v102 = vld [vmem:[#allocation2 + $0xb8] sm:$0xff]
    %v103 = vld [vmem:[#allocation2 + $0xc0] sm:$0xff]
    %v104 = vld [vmem:[#allocation2 + $0xc8] sm:$0xff]
    %v105 = vld [vmem:[#allocation2 + $0xd0] sm:$0xff]
    %v106 = vld [vmem:[#allocation2 + $0xd8] sm:$0xff]
    %v107 = vld [vmem:[#allocation2 + $0xe0] sm:$0xff]
    %v108 = vld [vmem:[#allocation2 + $0xe8] sm:$0xff]
    %v109 = vld [vmem:[#allocation2 + $0xf0] sm:$0xff]
    %v110 = vld [vmem:[#allocation2 + $0xf8] sm:$0xff]
    %v111 = vld [vmem:[#allocation3] sm:$0xff]
    %v112 = vld [vmem:[#allocation3 + $0x8] sm:$0xff]
    %v113 = vld [vmem:[#allocation3 + $0x10] sm:$0xff]
    %v114 = vld [vmem:[#allocation3 + $0x18] sm:$0xff]
    %v115 = vld [vmem:[#allocation3 + $0x20] sm:$0xff]
    %v116 = vld [vmem:[#allocation3 + $0x28] sm:$0xff]
    %v117 = vld [vmem:[#allocation3 + $0x30] sm:$0xff]
    %v118 = vld [vmem:[#allocation3 + $0x38] sm:$0xff]
    %v119 = vld [vmem:[#allocation6] sm:$0xff]
    %v120 = vld [vmem:[#allocation6 + $0x8] sm:$0xff]
    %v121 = vld [vmem:[#allocation6 + $0x10] sm:$0xff]
    %v122 = vld [vmem:[#allocation6 + $0x18] sm:$0xff]
    %v123 = vld [vmem:[#allocation6 + $0x20] sm:$0xff]
    %v124 = vld [vmem:[#allocation6 + $0x28] sm:$0xff]
    %v125 = vld [vmem:[#allocation6 + $0x30] sm:$0xff]
    %v126 = vld [vmem:[#allocation6 + $0x38] sm:$0xff]
    %v127 = vld [vmem:[#allocation6 + $0x40] sm:$0xff]
    %v128 = vld [vmem:[#allocation6 + $0x48] sm:$0xff]
    %v129 = vld [vmem:[#allocation6 + $0x50] sm:$0xff]
    %v130 = vld [vmem:[#allocation6 + $0x58] sm:$0xff]
    %v131 = vld [vmem:[#allocation6 + $0x60] sm:$0xff]
    %v132 = vld [vmem:[#allocation6 + $0x68] sm:$0xff]
    %v133 = vld [vmem:[#allocation6 + $0x70] sm:$0xff]
    %v134 = vld [vmem:[#allocation6 + $0x78] sm:$0xff]
    %v135 = vld [vmem:[#allocation6 + $0x80] sm:$0xff]
    %v136 = vld [vmem:[#allocation6 + $0x88] sm:$0xff]
    %v137 = vld [vmem:[#allocation6 + $0x90] sm:$0xff]
    %v138 = vld [vmem:[#allocation6 + $0x98] sm:$0xff]
    %v139 = vld [vmem:[#allocation6 + $0xa0] sm:$0xff]
    %v140 = vld [vmem:[#allocation6 + $0xa8] sm:$0xff]
    %v141 = vld [vmem:[#allocation6 + $0xb0] sm:$0xff]
    %v142 = vld [vmem:[#allocation6 + $0xb8] sm:$0xff]
    %v143 = vld [vmem:[#allocation6 + $0xc0] sm:$0xff]
    %v144 = vld [vmem:[#allocation6 + $0xc8] sm:$0xff]
    %v145 = vld [vmem:[#allocation6 + $0xd0] sm:$0xff]
    %v146 = vld [vmem:[#allocation6 + $0xd8] sm:$0xff]
    %v147 = vld [vmem:[#allocation6 + $0xe0] sm:$0xff]
    %v148 = vld [vmem:[#allocation6 + $0xe8] sm:$0xff]
    %v149 = vld [vmem:[#allocation6 + $0xf0] sm:$0xff]
    %v150 = vld [vmem:[#allocation6 + $0xf8] sm:$0xff]
    %v151 = vld [vmem:[#allocation6 + $0x100] sm:$0xff]
    %v152 = vld [vmem:[#allocation6 + $0x108] sm:$0xff]
    %v153 = vld [vmem:[#allocation6 + $0x110] sm:$0xff]
    %v154 = vld [vmem:[#allocation6 + $0x118] sm:$0xff]
    %v155 = vld [vmem:[#allocation6 + $0x120] sm:$0xff]
    %v156 = vld [vmem:[#allocation6 + $0x128] sm:$0xff]
    %v157 = vld [vmem:[#allocation6 + $0x130] sm:$0xff]
    %v158 = vld [vmem:[#allocation6 + $0x138] sm:$0xff]
    %v159 = vld [vmem:[#allocation6 + $0x140] sm:$0xff]
    %v160 = vld [vmem:[#allocation6 + $0x148] sm:$0xff]
    %v161 = vld [vmem:[#allocation6 + $0x150] sm:$0xff]
    %v162 = vld [vmem:[#allocation6 + $0x158] sm:$0xff]
    %v163 = vld [vmem:[#allocation6 + $0x160] sm:$0xff]
    %v164 = vld [vmem:[#allocation6 + $0x168] sm:$0xff]
    %v165 = vld [vmem:[#allocation6 + $0x170] sm:$0xff]
    %v166 = vld [vmem:[#allocation6 + $0x178] sm:$0xff]
    %v167 = vld [vmem:[#allocation6 + $0x180] sm:$0xff]
    %v168 = vld [vmem:[#allocation6 + $0x188] sm:$0xff]
    %v169 = vld [vmem:[#allocation6 + $0x190] sm:$0xff]
    %v170 = vld [vmem:[#allocation6 + $0x198] sm:$0xff]
    %v171 = vld [vmem:[#allocation6 + $0x1a0] sm:$0xff]
    %v172 = vld [vmem:[#allocation6 + $0x1a8] sm:$0xff]
    %v173 = vld [vmem:[#allocation6 + $0x1b0] sm:$0xff]
    %v174 = vld [vmem:[#allocation6 + $0x1b8] sm:$0xff]
    %v175 = vld [vmem:[#allocation6 + $0x1c0] sm:$0xff]
    %v176 = vld [vmem:[#allocation6 + $0x1c8] sm:$0xff]
    %v177 = vld [vmem:[#allocation6 + $0x1d0] sm:$0xff]
    %v178 = vld [vmem:[#allocation6 + $0x1d8] sm:$0xff]
    %v179 = vld [vmem:[#allocation6 + $0x1e0] sm:$0xff]
    %v180 = vld [vmem:[#allocation6 + $0x1e8] sm:$0xff]
    %v181 = vld [vmem:[#allocation6 + $0x1f0] sm:$0xff]
    %v182 = vld [vmem:[#allocation6 + $0x1f8] sm:$0xff]
    %183 = vmatprep.subr.mxu0 %v120
    %184 = vmatpush1.msra.mxu0 %v119
    %185 = vmatprep.subr.mxu0 %v124
    %186 = vmatpush1.msra.mxu0 %v123
    %187 = vmatprep.subr.mxu0 %v128
    %188 = vmatpush1.msra.mxu0 %v127
    %189 = vmatprep.subr.mxu0 %v132
    %190 = vmatpush1.msra.mxu0 %v131
    %191 = vmatprep.subr.mxu0 %v136
    %192 = vmatpush1.msra.mxu0 %v135
    %193 = vmatprep.subr.mxu0 %v140
    %194 = vmatpush1.msra.mxu0 %v139
    %195 = vmatprep.subr.mxu0 %v144
    %196 = vmatpush1.msra.mxu0 %v143
    %197 = vmatprep.subr.mxu0 %v148
    %198 = vmatpush1.msra.mxu0 %v147
    %199 = vmatprep.subr.mxu0 %v152
    %200 = vmatpush1.msra.mxu0 %v151
    %201 = vmatprep.subr.mxu0 %v156
    %202 = vmatpush1.msra.mxu0 %v155
    %203 = vmatprep.subr.mxu0 %v160
    %204 = vmatpush1.msra.mxu0 %v159
    %205 = vmatprep.subr.mxu0 %v164
    %206 = vmatpush1.msra.mxu0 %v163
    %207 = vmatprep.subr.mxu0 %v168
    %208 = vmatpush1.msra.mxu0 %v167
    %209 = vmatprep.subr.mxu0 %v172
    %210 = vmatpush1.msra.mxu0 %v171
    %211 = vmatprep.subr.mxu0 %v176
    %212 = vmatpush1.msra.mxu0 %v175
    %213 = vmatprep.subr.mxu0 %v180
    %214 = vmatpush1.msra.mxu0 %v179
    %215 = vmatprep.subr.mxu0 0.0
    %216 = vmatpush1.msra.mxu0 0.0
    %217 = vmatprep.subr.mxu0 0.0
    %218 = vmatpush1.msra.mxu0 0.0
    %219 = vmatprep.subr.mxu0 0.0
    %220 = vmatpush1.msra.mxu0 0.0
    %221 = vmatprep.subr.mxu0 0.0
    %222 = vmatpush1.msra.mxu0 0.0
    %223 = vmatprep.subr.mxu0 0.0
    %224 = vmatpush1.msra.mxu0 0.0
    %225 = vmatprep.subr.mxu0 0.0
    %226 = vmatpush1.msra.mxu0 0.0
    %227 = vmatprep.subr.mxu0 0.0
    %228 = vmatpush1.msra.mxu0 0.0
    %229 = vmatprep.subr.mxu0 0.0
    %230 = vmatpush1.msra.mxu0 0.0
    %231 = vmatprep.subr.mxu0 0.0
    %232 = vmatpush1.msra.mxu0 0.0
    %233 = vmatprep.subr.mxu0 0.0
    %234 = vmatpush1.msra.mxu0 0.0
    %235 = vmatprep.subr.mxu0 0.0
    %236 = vmatpush1.msra.mxu0 0.0
    %237 = vmatprep.subr.mxu0 0.0
    %238 = vmatpush1.msra.mxu0 0.0
    %239 = vmatprep.subr.mxu0 0.0
    %240 = vmatpush1.msra.mxu0 0.0
    %241 = vmatprep.subr.mxu0 0.0
    %242 = vmatpush1.msra.mxu0 0.0
    %243 = vmatprep.subr.mxu0 0.0
    %244 = vmatpush1.msra.mxu0 0.0
    %245 = vmatprep.subr.mxu0 0.0
    %246 = vmatpush1.msra.mxu0 0.0
    %247 = vmatprep.mubr.f32.mxu0 0.0
    %248 = vmatmul.mubr.f32.gmra.mrb[0].mxu0 %v111
    %v249 = vpop.f32.mrb[0].mxu0
    %v250 = vadd.f32 0.0, %v249
    %v251 = vpop.f32.mrb[0].mxu0
    %v252 = vadd.f32 0.0, %v251
    %253 = vmatprep.mubr.f32.mxu0 0.0
    %254 = vmatmul.mubr.f32.gmra.mrb[0].mxu0 %v112
    %v255 = vpop.f32.mrb[0].mxu0
    %v256 = vadd.f32 0.0, %v255
    %v257 = vpop.f32.mrb[0].mxu0
    %v258 = vadd.f32 0.0, %v257
    %259 = vmatprep.mubr.f32.mxu0 0.0
    %260 = vmatmul.mubr.f32.gmra.mrb[0].mxu0 %v113
    %v261 = vpop.f32.mrb[0].mxu0
    %v262 = vadd.f32 0.0, %v261
    %v263 = vpop.f32.mrb[0].mxu0
    %v264 = vadd.f32 0.0, %v263
    %265 = vmatprep.mubr.f32.mxu0 0.0
    %266 = vmatmul.mubr.f32.gmra.mrb[0].mxu0 %v114
    %v267 = vpop.f32.mrb[0].mxu0
    %v268 = vadd.f32 0.0, %v267
    %v269 = vpop.f32.mrb[0].mxu0
    %v270 = vadd.f32 0.0, %v269
    %271 = vmatprep.mubr.f32.mxu0 0.0
    %272 = vmatmul.mubr.f32.gmra.mrb[0].mxu0 %v115
    %v273 = vpop.f32.mrb[0].mxu0
    %v274 = vadd.f32 0.0, %v273
    %v275 = vpop.f32.mrb[0].mxu0
    %v276 = vadd.f32 0.0, %v275
    %277 = vmatprep.mubr.f32.mxu0 0.0
    %278 = vmatmul.mubr.f32.gmra.mrb[0].mxu0 %v116
    %v279 = vpop.f32.mrb[0].mxu0
    %v280 = vadd.f32 0.0, %v279
    %v281 = vpop.f32.mrb[0].mxu0
    %v282 = vadd.f32 0.0, %v281
    %283 = vmatprep.mubr.f32.mxu0 0.0
    %284 = vmatmul.mubr.f32.gmra.mrb[0].mxu0 %v117
    %v285 = vpop.f32.mrb[0].mxu0
    %v286 = vadd.f32 0.0, %v285
    %v287 = vpop.f32.mrb[0].mxu0
    %v288 = vadd.f32 0.0, %v287
    %289 = vmatprep.mubr.f32.mxu0 0.0
    %290 = vmatmul.mubr.f32.gmra.mrb[0].mxu0 %v118
    %v291 = vpop.f32.mrb[0].mxu0
    %v292 = vadd.f32 0.0, %v291
    %v293 = vpop.f32.mrb[0].mxu0
    %v294 = vadd.f32 0.0, %v293
    %295 = vdwg.mxu0
    %296 = vmatprep.subr.mxu0 %v122
    %297 = vmatpush1.msra.mxu0 %v121
    %298 = vmatprep.subr.mxu0 %v126
    %299 = vmatpush1.msra.mxu0 %v125
    %300 = vmatprep.subr.mxu0 %v130
    %301 = vmatpush1.msra.mxu0 %v129
    %302 = vmatprep.subr.mxu0 %v134
    %303 = vmatpush1.msra.mxu0 %v133
    %304 = vmatprep.subr.mxu0 %v138
    %305 = vmatpush1.msra.mxu0 %v137
    %306 = vmatprep.subr.mxu0 %v142
    %307 = vmatpush1.msra.mxu0 %v141
    %308 = vmatprep.subr.mxu0 %v146
    %309 = vmatpush1.msra.mxu0 %v145
    %310 = vmatprep.subr.mxu0 %v150
    %311 = vmatpush1.msra.mxu0 %v149
    %312 = vmatprep.subr.mxu0 %v154
    %313 = vmatpush1.msra.mxu0 %v153
    %314 = vmatprep.subr.mxu0 %v158
    %315 = vmatpush1.msra.mxu0 %v157
    %316 = vmatprep.subr.mxu0 %v162
    %317 = vmatpush1.msra.mxu0 %v161
    %318 = vmatprep.subr.mxu0 %v166
    %319 = vmatpush1.msra.mxu0 %v165
    %320 = vmatprep.subr.mxu0 %v170
    %321 = vmatpush1.msra.mxu0 %v169
    %322 = vmatprep.subr.mxu0 %v174
    %323 = vmatpush1.msra.mxu0 %v173
    %324 = vmatprep.subr.mxu0 %v178
    %325 = vmatpush1.msra.mxu0 %v177
    %326 = vmatprep.subr.mxu0 %v182
    %327 = vmatpush1.msra.mxu0 %v181
    %328 = vmatprep.subr.mxu0 0.0
    %329 = vmatpush1.msra.mxu0 0.0
    %330 = vmatprep.subr.mxu0 0.0
    %331 = vmatpush1.msra.mxu0 0.0
    %332 = vmatprep.subr.mxu0 0.0
    %333 = vmatpush1.msra.mxu0 0.0
    %334 = vmatprep.subr.mxu0 0.0
    %335 = vmatpush1.msra.mxu0 0.0
    %336 = vmatprep.subr.mxu0 0.0
    %337 = vmatpush1.msra.mxu0 0.0
    %338 = vmatprep.subr.mxu0 0.0
    %339 = vmatpush1.msra.mxu0 0.0
    %340 = vmatprep.subr.mxu0 0.0
    %341 = vmatpush1.msra.mxu0 0.0
    %342 = vmatprep.subr.mxu0 0.0
    %343 = vmatpush1.msra.mxu0 0.0
    %344 = vmatprep.subr.mxu0 0.0
    %345 = vmatpush1.msra.mxu0 0.0
    %346 = vmatprep.subr.mxu0 0.0
    %347 = vmatpush1.msra.mxu0 0.0
    %348 = vmatprep.subr.mxu0 0.0
    %349 = vmatpush1.msra.mxu0 0.0
    %350 = vmatprep.subr.mxu0 0.0
    %351 = vmatpush1.msra.mxu0 0.0
    %352 = vmatprep.subr.mxu0 0.0
    %353 = vmatpush1.msra.mxu0 0.0
    %354 = vmatprep.subr.mxu0 0.0
    %355 = vmatpush1.msra.mxu0 0.0
    %356 = vmatprep.subr.mxu0 0.0
    %357 = vmatpush1.msra.mxu0 0.0
    %358 = vmatprep.subr.mxu0 0.0
    %359 = vmatpush1.msra.mxu0 0.0
    %360 = vmatprep.mubr.f32.mxu0 0.0
    %361 = vmatmul.mubr.f32.gmra.mrb[0].mxu0 %v111
    %v362 = vpop.f32.mrb[0].mxu0
    %v363 = vadd.f32 0.0, %v362
    %v364 = vpop.f32.mrb[0].mxu0
    %v365 = vadd.f32 0.0, %v364
    %366 = vmatprep.mubr.f32.mxu0 0.0
    %367 = vmatmul.mubr.f32.gmra.mrb[0].mxu0 %v112
    %v368 = vpop.f32.mrb[0].mxu0
    %v369 = vadd.f32 0.0, %v368
    %v370 = vpop.f32.mrb[0].mxu0
    %v371 = vadd.f32 0.0, %v370
    %372 = vmatprep.mubr.f32.mxu0 0.0
    %373 = vmatmul.mubr.f32.gmra.mrb[0].mxu0 %v113
    %v374 = vpop.f32.mrb[0].mxu0
    %v375 = vadd.f32 0.0, %v374
    %v376 = vpop.f32.mrb[0].mxu0
    %v377 = vadd.f32 0.0, %v376
    %378 = vmatprep.mubr.f32.mxu0 0.0
    %379 = vmatmul.mubr.f32.gmra.mrb[0].mxu0 %v114
    %v380 = vpop.f32.mrb[0].mxu0
    %v381 = vadd.f32 0.0, %v380
    %v382 = vpop.f32.mrb[0].mxu0
    %v383 = vadd.f32 0.0, %v382
    %384 = vmatprep.mubr.f32.mxu0 0.0
    %385 = vmatmul.mubr.f32.gmra.mrb[0].mxu0 %v115
    %v386 = vpop.f32.mrb[0].mxu0
    %v387 = vadd.f32 0.0, %v386
    %v388 = vpop.f32.mrb[0].mxu0
    %v389 = vadd.f32 0.0, %v388
    %390 = vmatprep.mubr.f32.mxu0 0.0
    %391 = vmatmul.mubr.f32.gmra.mrb[0].mxu0 %v116
    %v392 = vpop.f32.mrb[0].mxu0
    %v393 = vadd.f32 0.0, %v392
    %v394 = vpop.f32.mrb[0].mxu0
    %v395 = vadd.f32 0.0, %v394
    %396 = vmatprep.mubr.f32.mxu0 0.0
    %397 = vmatmul.mubr.f32.gmra.mrb[0].mxu0 %v117
    %v398 = vpop.f32.mrb[0].mxu0
    %v399 = vadd.f32 0.0, %v398
    %v400 = vpop.f32.mrb[0].mxu0
    %v401 = vadd.f32 0.0, %v400
    %402 = vmatprep.mubr.f32.mxu0 0.0
    %403 = vmatmul.mubr.f32.gmra.mrb[0].mxu0 %v118
    %v404 = vpop.f32.mrb[0].mxu0
    %v405 = vadd.f32 0.0, %v404
    %v406 = vpop.f32.mrb[0].mxu0
    %v407 = vadd.f32 0.0, %v406
    %408 = vdwg.mxu0
    %v409 = vadd.f32 %v79, %v250
    %v410 = vadd.f32 %v80, %v252
    %v411 = vadd.f32 %v81, %v363
    %v412 = vadd.f32 %v82, %v365
    %v413 = vadd.f32 %v83, %v256
    %v414 = vadd.f32 %v84, %v258
    %v415 = vadd.f32 %v85, %v369
    %v416 = vadd.f32 %v86, %v371
    %v417 = vadd.f32 %v87, %v262
    %v418 = vadd.f32 %v88, %v264
    %v419 = vadd.f32 %v89, %v375
    %v420 = vadd.f32 %v90, %v377
    %v421 = vadd.f32 %v91, %v268
    %v422 = vadd.f32 %v92, %v270
    %v423 = vadd.f32 %v93, %v381
    %v424 = vadd.f32 %v94, %v383
    %v425 = vadd.f32 %v95, %v274
    %v426 = vadd.f32 %v96, %v276
    %v427 = vadd.f32 %v97, %v387
    %v428 = vadd.f32 %v98, %v389
    %v429 = vadd.f32 %v99, %v280
    %v430 = vadd.f32 %v100, %v282
    %v431 = vadd.f32 %v101, %v393
    %v432 = vadd.f32 %v102, %v395
    %v433 = vadd.f32 %v103, %v286
    %v434 = vadd.f32 %v104, %v288
    %v435 = vadd.f32 %v105, %v399
    %v436 = vadd.f32 %v106, %v401
    %v437 = vadd.f32 %v107, %v292
    %v438 = vadd.f32 %v108, %v294
    %v439 = vadd.f32 %v109, %v405
    %v440 = vadd.f32 %v110, %v407
    %441 = vst [vmem:[#allocation2] sm:$0xff] %v409
    %442 = vst [vmem:[#allocation2 + $0x8] sm:$0xff] %v410
    %443 = vst [vmem:[#allocation2 + $0x10] sm:$0xff] %v411
    %444 = vst [vmem:[#allocation2 + $0x18] sm:$0xff] %v412
    %445 = vst [vmem:[#allocation2 + $0x20] sm:$0xff] %v413
    %446 = vst [vmem:[#allocation2 + $0x28] sm:$0xff] %v414
    %447 = vst [vmem:[#allocation2 + $0x30] sm:$0xff] %v415
    %448 = vst [vmem:[#allocation2 + $0x38] sm:$0xff] %v416
    %449 = vst [vmem:[#allocation2 + $0x40] sm:$0xff] %v417
    %450 = vst [vmem:[#allocation2 + $0x48] sm:$0xff] %v418
    %451 = vst [vmem:[#allocation2 + $0x50] sm:$0xff] %v419
    %452 = vst [vmem:[#allocation2 + $0x58] sm:$0xff] %v420
    %453 = vst [vmem:[#allocation2 + $0x60] sm:$0xff] %v421
    %454 = vst [vmem:[#allocation2 + $0x68] sm:$0xff] %v422
    %455 = vst [vmem:[#allocation2 + $0x70] sm:$0xff] %v423
    %456 = vst [vmem:[#allocation2 + $0x78] sm:$0xff] %v424
    %457 = vst [vmem:[#allocation2 + $0x80] sm:$0xff] %v425
    %458 = vst [vmem:[#allocation2 + $0x88] sm:$0xff] %v426
    %459 = vst [vmem:[#allocation2 + $0x90] sm:$0xff] %v427
    %460 = vst [vmem:[#allocation2 + $0x98] sm:$0xff] %v428
    %461 = vst [vmem:[#allocation2 + $0xa0] sm:$0xff] %v429
    %462 = vst [vmem:[#allocation2 + $0xa8] sm:$0xff] %v430
    %463 = vst [vmem:[#allocation2 + $0xb0] sm:$0xff] %v431
    %464 = vst [vmem:[#allocation2 + $0xb8] sm:$0xff] %v432
    %465 = vst [vmem:[#allocation2 + $0xc0] sm:$0xff] %v433
    %466 = vst [vmem:[#allocation2 + $0xc8] sm:$0xff] %v434
    %467 = vst [vmem:[#allocation2 + $0xd0] sm:$0xff] %v435
    %468 = vst [vmem:[#allocation2 + $0xd8] sm:$0xff] %v436
    %469 = vst [vmem:[#allocation2 + $0xe0] sm:$0xff] %v437
    %470 = vst [vmem:[#allocation2 + $0xe8] sm:$0xff] %v438
    %471 = vst [vmem:[#allocation2 + $0xf0] sm:$0xff] %v439
    %472 = vst [vmem:[#allocation2 + $0xf8] sm:$0xff] %v440
    // Predicated region
    $region26: #{tpu_custom_call.1} parent=1 // pred_check
      %p473 = pneg %p43
    $region27: #{tpu_custom_call.1} parent=1 // pred_check_branch
      %475 = sbr.rel (%p473) target = $region29
    $region28: #{tpu_custom_call.1} parent=1 // pred_region
      %v476 = vld [vmem:[#allocation2] sm:$0xff]
      %v477 = vld [vmem:[#allocation2 + $0x8] sm:$0xff]
      %v478 = vld [vmem:[#allocation2 + $0x10] sm:$0xff]
      %v479 = vld [vmem:[#allocation2 + $0x18] sm:$0xff]
      %v480 = vld [vmem:[#allocation2 + $0x20] sm:$0xff]
      %v481 = vld [vmem:[#allocation2 + $0x28] sm:$0xff]
      %v482 = vld [vmem:[#allocation2 + $0x30] sm:$0xff]
      %v483 = vld [vmem:[#allocation2 + $0x38] sm:$0xff]
      %v484 = vld [vmem:[#allocation2 + $0x40] sm:$0xff]
      %v485 = vld [vmem:[#allocation2 + $0x48] sm:$0xff]
      %v486 = vld [vmem:[#allocation2 + $0x50] sm:$0xff]
      %v487 = vld [vmem:[#allocation2 + $0x58] sm:$0xff]
      %v488 = vld [vmem:[#allocation2 + $0x60] sm:$0xff]
      %v489 = vld [vmem:[#allocation2 + $0x68] sm:$0xff]
      %v490 = vld [vmem:[#allocation2 + $0x70] sm:$0xff]
      %v491 = vld [vmem:[#allocation2 + $0x78] sm:$0xff]
      %v492 = vld [vmem:[#allocation2 + $0x80] sm:$0xff]
      %v493 = vld [vmem:[#allocation2 + $0x88] sm:$0xff]
      %v494 = vld [vmem:[#allocation2 + $0x90] sm:$0xff]
      %v495 = vld [vmem:[#allocation2 + $0x98] sm:$0xff]
      %v496 = vld [vmem:[#allocation2 + $0xa0] sm:$0xff]
      %v497 = vld [vmem:[#allocation2 + $0xa8] sm:$0xff]
      %v498 = vld [vmem:[#allocation2 + $0xb0] sm:$0xff]
      %v499 = vld [vmem:[#allocation2 + $0xb8] sm:$0xff]
      %v500 = vld [vmem:[#allocation2 + $0xc0] sm:$0xff]
      %v501 = vld [vmem:[#allocation2 + $0xc8] sm:$0xff]
      %v502 = vld [vmem:[#allocation2 + $0xd0] sm:$0xff]
      %v503 = vld [vmem:[#allocation2 + $0xd8] sm:$0xff]
      %v504 = vld [vmem:[#allocation2 + $0xe0] sm:$0xff]
      %v505 = vld [vmem:[#allocation2 + $0xe8] sm:$0xff]
      %v506 = vld [vmem:[#allocation2 + $0xf0] sm:$0xff]
      %v507 = vld [vmem:[#allocation2 + $0xf8] sm:$0xff]
      %v508 = vld [vmem:[%s2] sm:$0xf]
      %v510 = vlaneseq
      %v511 = vshrl.u32 %v510, 7
      %v512 = vsub.s32 0, %v511
      %v513 = vrot.slane %v508, %v512
      %v514 = vlaneseq
      %v515 = vshrl.u32 %v514, 7
      %v516 = vsub.s32 1, %v515
      %v517 = vrot.slane %v508, %v516
      %v518 = vlaneseq
      %v519 = vshrl.u32 %v518, 7
      %v520 = vsub.s32 2, %v519
      %v521 = vrot.slane %v508, %v520
      %v522 = vlaneseq
      %v523 = vshrl.u32 %v522, 7
      %v524 = vsub.s32 3, %v523
      %v525 = vrot.slane %v508, %v524
      %v530 = vadd.f32 %v476, %v513
      %v531 = vadd.f32 %v477, %v517
      %v532 = vadd.f32 %v478, %v521
      %v533 = vadd.f32 %v479, %v525
      %v534 = vadd.f32 %v480, %v513
      %v535 = vadd.f32 %v481, %v517
      %v536 = vadd.f32 %v482, %v521
      %v537 = vadd.f32 %v483, %v525
      %v538 = vadd.f32 %v484, %v513
      %v539 = vadd.f32 %v485, %v517
      %v540 = vadd.f32 %v486, %v521
      %v541 = vadd.f32 %v487, %v525
      %v542 = vadd.f32 %v488, %v513
      %v543 = vadd.f32 %v489, %v517
      %v544 = vadd.f32 %v490, %v521
      %v545 = vadd.f32 %v491, %v525
      %v546 = vadd.f32 %v492, %v513
      %v547 = vadd.f32 %v493, %v517
      %v548 = vadd.f32 %v494, %v521
      %v549 = vadd.f32 %v495, %v525
      %v550 = vadd.f32 %v496, %v513
      %v551 = vadd.f32 %v497, %v517
      %v552 = vadd.f32 %v498, %v521
      %v553 = vadd.f32 %v499, %v525
      %v554 = vadd.f32 %v500, %v513
      %v555 = vadd.f32 %v501, %v517
      %v556 = vadd.f32 %v502, %v521
      %v557 = vadd.f32 %v503, %v525
      %v558 = vadd.f32 %v504, %v513
      %v559 = vadd.f32 %v505, %v517
      %v560 = vadd.f32 %v506, %v521
      %v561 = vadd.f32 %v507, %v525
      %562 = vst [vmem:[#allocation8] sm:$0xff] %v530
      %563 = vst [vmem:[#allocation8 + $0x8] sm:$0xff] %v531
      %564 = vst [vmem:[#allocation8 + $0x10] sm:$0xff] %v532
      %565 = vst [vmem:[#allocation8 + $0x18] sm:$0xff] %v533
      %566 = vst [vmem:[#allocation8 + $0x20] sm:$0xff] %v534
      %567 = vst [vmem:[#allocation8 + $0x28] sm:$0xff] %v535
      %568 = vst [vmem:[#allocation8 + $0x30] sm:$0xff] %v536
      %569 = vst [vmem:[#allocation8 + $0x38] sm:$0xff] %v537
      %570 = vst [vmem:[#allocation8 + $0x40] sm:$0xff] %v538
      %571 = vst [vmem:[#allocation8 + $0x48] sm:$0xff] %v539
      %572 = vst [vmem:[#allocation8 + $0x50] sm:$0xff] %v540
      %573 = vst [vmem:[#allocation8 + $0x58] sm:$0xff] %v541
      %574 = vst [vmem:[#allocation8 + $0x60] sm:$0xff] %v542
      %575 = vst [vmem:[#allocation8 + $0x68] sm:$0xff] %v543
      %576 = vst [vmem:[#allocation8 + $0x70] sm:$0xff] %v544
      %577 = vst [vmem:[#allocation8 + $0x78] sm:$0xff] %v545
      %578 = vst [vmem:[#allocation8 + $0x80] sm:$0xff] %v546
      %579 = vst [vmem:[#allocation8 + $0x88] sm:$0xff] %v547
      %580 = vst [vmem:[#allocation8 + $0x90] sm:$0xff] %v548
      %581 = vst [vmem:[#allocation8 + $0x98] sm:$0xff] %v549
      %582 = vst [vmem:[#allocation8 + $0xa0] sm:$0xff] %v550
      %583 = vst [vmem:[#allocation8 + $0xa8] sm:$0xff] %v551
      %584 = vst [vmem:[#allocation8 + $0xb0] sm:$0xff] %v552
      %585 = vst [vmem:[#allocation8 + $0xb8] sm:$0xff] %v553
      %586 = vst [vmem:[#allocation8 + $0xc0] sm:$0xff] %v554
      %587 = vst [vmem:[#allocation8 + $0xc8] sm:$0xff] %v555
      %588 = vst [vmem:[#allocation8 + $0xd0] sm:$0xff] %v556
      %589 = vst [vmem:[#allocation8 + $0xd8] sm:$0xff] %v557
      %590 = vst [vmem:[#allocation8 + $0xe0] sm:$0xff] %v558
      %591 = vst [vmem:[#allocation8 + $0xe8] sm:$0xff] %v559
      %592 = vst [vmem:[#allocation8 + $0xf0] sm:$0xff] %v560
      %593 = vst [vmem:[#allocation8 + $0xf8] sm:$0xff] %v561
    $region29: #{tpu_custom_call.1} parent=1 // pred_fallthru
      _
    // Predicated region
    $region30: #{tpu_custom_call.1} parent=1 // pred_check
      _
    $region31: #{tpu_custom_call.1} parent=1 // pred_check_branch
      %595 = sbr.rel (0) target = $region33
    $region32: #{tpu_custom_call.1} parent=1 // pred_region
      %s597 = ssub.s32 4096, 4096
      %598 = vsyncadd [#allocation5], %s597
      %s599 = sshll.u32 [#allocation8], 4
      %s600 = int_to_ptr.vmem [resolvable:$true] %s599
      %605 = dma.vmem_to_hbm [thread:$0]  %s600, 4096, %s3, [#allocation5], 512, 512, 32
    $region33: #{tpu_custom_call.1} parent=1 // pred_fallthru
      _
    // Predicated region
    $region34: #{tpu_custom_call.1} parent=1 // pred_check
      _
    $region35: #{tpu_custom_call.1} parent=1 // pred_check_branch
      %607 = sbr.rel (0) target = $region37
    $region36: #{tpu_custom_call.1} parent=1 // pred_region
      %608 = dma.done [#allocation5], 4096
    $region37: #{tpu_custom_call.1} parent=1 // pred_fallthru
      _
    %609 = vsyncpa [#allocation4], 1
    %610 = vsyncpa [#allocation7], 1
    %611 = vsyncpa [#allocation5], 1

</llo_original>
